<compile_context>
chip_gen: v6e
topology: v6e:2x2x1
jax: 0.10.0
libtpu: 0.0.40
codegen_flags: <defaults>
</compile_context>

<pallas_src>
import numpy as np
import jax
import jax.numpy as jnp
from jax import lax
from jax.experimental import pallas as pl
from jax.experimental.pallas import tpu as pltpu


_SLAB_TARGET_BYTES = 256 * 1024  # ceiling for one in-kernel broadcast/store chunk


def _sublane(dtype) -> int:
    """Sublane packing (second-to-last block dim alignment) per dtype."""
    return {4: 8, 2: 16, 1: 32}.get(jnp.dtype(dtype).itemsize, 8)


def _round_down(v, m):
    return (v // m) * m


def _make_expander_kernel(chunk_rows):
    """Kernel over a (TP, S) input tile and a (TP, TN, S) output tile.

    The store is chunked along rows so the broadcast intermediate stays
    bounded (<= ~_SLAB_TARGET_BYTES) regardless of how large the tiles are.
    """

    def kernel(x_ref, o_ref):
        tp, tn, s = o_ref.shape
        full_chunks = tp // chunk_rows
        rem = tp - full_chunks * chunk_rows

        def write_rows(r0, nrows):
            xr = x_ref[pl.ds(r0, nrows), :]  # (nrows, S)
            o_ref[pl.ds(r0, nrows), :, :] = jnp.broadcast_to(
                xr[:, None, :], (nrows, tn, s)
            )

        if full_chunks > 0:
            def body(c, carry):
                write_rows(pl.multiple_of(c * chunk_rows, chunk_rows), chunk_rows)
                return carry

            lax.fori_loop(0, full_chunks, body, 0, unroll=False)

        if rem > 0:  # static tail (chunk_rows does not divide TP)
            write_rows(full_chunks * chunk_rows, rem)

    return kernel


def expander_forward(x, dim, n=None, *, block_rows=None, block_n=None):
    """JAX/Pallas equivalent of Expander(dim).forward(x, n).

    block_rows / block_n optionally override the tile heuristics (must respect
    TPU alignment: multiple of the dtype sublane packing, or the full extent).
    """
    ndim = x.ndim
    if dim < 0:
        dim += ndim
    assert 0 <= dim < ndim, f"dim out of range for rank-{ndim} input"
    if dim == 0:
        assert n is not None, "n must be provided when dim == 0"
    elif n is None:
        n = x.shape[dim]
    n = int(n)

    shp = tuple(int(d) for d in x.shape)
    prefix = shp[: dim + 1]
    suffix = shp[dim + 1:]
    P = int(np.prod(prefix)) if prefix else 1
    S = int(np.prod(suffix)) if suffix else 1

    itemsize = jnp.dtype(x.dtype).itemsize
    sub = _sublane(x.dtype)
    row_bytes = S * itemsize  # one flattened input row

    # ------------------------------------------------------------ VMEM budget
    try:
        vmem_cap = int(pltpu.get_tpu_info().vmem_capacity_bytes)
    except Exception:
        vmem_cap = 64 * 1024 * 1024  # conservative fallback (v7x per-core)
    # Scoped VMEM limit we are willing to use; double-buffered (in + out)
    # tiles plus compiler headroom must stay under it.
    vmem_limit = max(32 << 20, min(int(0.70 * vmem_cap), 64 << 20))
    tile_budget = max(vmem_limit // 2 - (2 << 20), 64 * 1024)

    # ------------------------------------------------------------ TN (n tile)
    if block_n is not None:
        TN = int(block_n)
    else:
        # Keep one broadcast slab (TN * S) modest; TN must be a multiple of the
        # sublane packing, or equal to n.
        tn_cap = max(1, _SLAB_TARGET_BYTES // row_bytes)
        if n <= sub or n * row_bytes <= _SLAB_TARGET_BYTES:
            TN = n
        else:
            TN = max(sub, _round_down(min(tn_cap, n), sub))
    TN = min(TN, n) if TN != n else TN

    # ------------------------------------------------------------ TP (row tile)
    per_row_out = TN * row_bytes
    if block_rows is not None:
        TP = int(block_rows)
    else:
        TP = tile_budget // (row_bytes + per_row_out)
        if TP >= P:
            TP = P  # full extent: always a legal block dim
        else:
            TP = max(sub, _round_down(TP, sub))
    TP = min(TP, P) if TP != P else TP

    # Row-chunk for the in-kernel store loop (bounds vreg pressure).
    CH = max(1, _SLAB_TARGET_BYTES // max(per_row_out, 1))
    CH = min(CH, TP)
    if CH < TP and CH >= sub:
        CH = _round_down(CH, sub)

    xf = x.reshape(P, S)
    grid = (pl.cdiv(P, TP), pl.cdiv(n, TN))

    bytes_accessed = (P * S + P * n * S) * itemsize

    out_flat = pl.pallas_call(
        _make_expander_kernel(CH),
        out_shape=jax.ShapeDtypeStruct((P, n, S), x.dtype),
        grid=grid,
        in_specs=[pl.BlockSpec((TP, S), lambda i, j: (i, 0))],
        out_specs=pl.BlockSpec((TP, TN, S), lambda i, j: (i, j, 0)),
        compiler_params=pltpu.CompilerParams(
            dimension_semantics=("parallel", "parallel"),
            vmem_limit_bytes=int(vmem_limit),
        ),
        cost_estimate=pl.CostEstimate(
            flops=0, transcendentals=0, bytes_accessed=int(bytes_accessed)
        ),
    )(xf)

    return out_flat.reshape(prefix + (n,) + suffix)


if __name__ == "__main__":
    key = jax.random.PRNGKey(0)
    k1, k2, k3, k4 = jax.random.split(key, 4)

    # 1) Expander(dim=1) on [batch, N, C] unary predicates; n defaults to N.
    B, N, C = 2, 8, 128
    x = jax.random.normal(k1, (B, N, C), dtype=jnp.float32)
    out = jax.block_until_ready(expander_forward(x, dim=1))       # (B, N, N, C)
    ref = jnp.broadcast_to(x[:, :, None, :], (B, N, N, C))
    assert out.shape == (B, N, N, C)
    np.testing.assert_array_equal(np.asarray(out), np.asarray(ref))

    # 1b) Negative dim normalization (dim=-2 == dim=1 here).
    out_neg = jax.block_until_ready(expander_forward(x, dim=-2))
    np.testing.assert_array_equal(np.asarray(out_neg), np.asarray(ref))

    # 2) dim=0 path (requires explicit n).
    x0 = jax.random.normal(k2, (B, C), dtype=jnp.float32)
    out0 = jax.block_until_ready(expander_forward(x0, dim=0, n=N))  # (B, N, C)
    ref0 = jnp.broadcast_to(x0[:, None, :], (B, N, C))
    np.testing.assert_array_equal(np.asarray(out0), np.asarray(ref0))

    # 3) Ragged row grid (P=10 not divisible by the 8-row tile) + narrow suffix.
    x2 = jax.random.normal(k3, (2, 5, 3, 4), dtype=jnp.float32)
    out2 = jax.block_until_ready(expander_forward(x2, dim=1, n=6, block_rows=8))
    ref2 = jnp.broadcast_to(x2[:, :, None, :, :], (2, 5, 6, 3, 4))
    np.testing.assert_array_equal(np.asarray(out2), np.asarray(ref2))

    # 4) Ragged n grid (n=20 tiled by TN=8, last block partial).
    x3 = jax.random.normal(k4, (2, 4, 3, 8), dtype=jnp.float32)
    out3 = jax.block_until_ready(expander_forward(x3, dim=1, n=20, block_n=8))
    ref3 = jnp.broadcast_to(x3[:, :, None, :, :], (2, 4, 20, 3, 8))
    np.testing.assert_array_equal(np.asarray(out3), np.asarray(ref3))

    print("KERNEL_OK")
</pallas_src>

<mosaic_0001>
module attributes {stable_mosaic.version = 11 : i64} {
  func.func @kernel(%arg0: i32, %arg1: i32, %arg2: memref<16x128xf32, #tpu.memory_space<vmem>>, %arg3: memref<16x8x128xf32, #tpu.memory_space<vmem>>) attributes {dimension_semantics = [#tpu.dimension_semantics<parallel>, #tpu.dimension_semantics<parallel>], iteration_bounds = array<i64: 1, 1>, scalar_prefetch = 0 : i64, scratch_operands = 0 : i64, tpu.core_type = #tpu.core_type<tc>, window_params = [{transform_indices = @transform_0, window_bounds = array<i64: 16, 128>}, {transform_indices = @transform_1, window_bounds = array<i64: 16, 8, 128>}]} {
    %c0_i32 = arith.constant 0 : i32
    %c16_i32 = arith.constant 16 : i32
    %0 = arith.muli %c0_i32, %c16_i32 : i32
    %1 = tpu.assume_multiple %0, 16 : i32
    %2 = arith.index_cast %1 : i32 to index
    %c0 = arith.constant 0 : index
    %3 = vector.load %arg2[%2, %c0] : memref<16x128xf32, #tpu.memory_space<vmem>>, vector<16x128xf32>
    %4 = vector.shape_cast %3 : vector<16x128xf32> to vector<16x1x128xf32>
    %5 = vector.shape_cast %4 : vector<16x1x128xf32> to vector<16x1x128xf32>
    %6 = vector.broadcast %5 : vector<16x1x128xf32> to vector<16x8x128xf32>
    %7 = arith.index_cast %1 : i32 to index
    %c0_0 = arith.constant 0 : index
    %c0_1 = arith.constant 0 : index
    %8 = vector.load %arg3[%7, %c0_0, %c0_1] : memref<16x8x128xf32, #tpu.memory_space<vmem>>, vector<16x8x128xf32>
    tpu.vector_store %arg3[%7, %c0_0, %c0_1], %6 {strides = array<i32>} : memref<16x8x128xf32, #tpu.memory_space<vmem>>, vector<16x8x128xf32>,
    %c1_i32 = arith.constant 1 : i32
    return
  }
  func.func @transform_0(%arg0: i32, %arg1: i32) -> (i32, i32) {
    %c0_i32 = arith.constant 0 : i32
    %c0_i32_0 = arith.constant 0 : i32
    return %arg0, %c0_i32 : i32, i32
  }
  func.func @transform_1(%arg0: i32, %arg1: i32) -> (i32, i32, i32) {
    %c0_i32 = arith.constant 0 : i32
    %c0_i32_0 = arith.constant 0 : i32
    return %arg0, %arg1, %c0_i32 : i32, i32, i32
  }
}

</mosaic_0001>

<llo_original>
// kernel: tpu_custom_call.1
$region0: #{tpu_custom_call.1}
  #allocation0 [shape = 'u32[]', space=smem, size = 0x4, offset = 0x4, fixed_abs, tag = 'smem constant byte address 0x4 - core index']
  #allocation1 [shape = 'u32[144,128]{1,0:T(1,128)}', space=vmem, size = 0x12000, scoped, tag = 'internal scratch']
  %s0 = inlined_call_operand.hbm [shape: f32[16,128], index: 0, kind: input, shape index: {}]
  %s1 = inlined_call_operand.hbm [shape: f32[16,8,128], index: 1, kind: output, shape index: {}]
  %s2 = sld [smem:[#allocation0]]
  $region18: #{tpu_custom_call.1} parent=0
    _
  %s4 = ssub.s32 1, %s2
  %s5 = scalar_select 0, %s4, %s2
  $region1: #{tpu_custom_call.1} parent=0
    #allocation2 [shape = 'u8[8192]{0}', space=vmem, size = 0x2000, scoped, tag = 'input window, operand 0, single buffered']
    #allocation3 [shape = 's32[1]{0}', space=sflag, size = 0x4, scoped, tag = 'scoped memory for tpu_custom_call.1']
    #allocation4 [shape = 's32[1]{0}', space=sflag, size = 0x4, scoped, tag = 'scoped memory for tpu_custom_call.1']
    #allocation5 [shape = 'u8[65536]{0}', space=vmem, size = 0x10000, scoped, tag = 'output window, operand 0, single buffered']
    %6 = vsyncpa [#allocation3], 0
    %7 = vsyncpa [#allocation4], 0
    // Predicated region
    $region2: #{tpu_custom_call.1} parent=1 // pred_check
      _
    $region3: #{tpu_custom_call.1} parent=1 // pred_check_branch
      %9 = sbr.rel (0) target = $region5
    $region4: #{tpu_custom_call.1} parent=1 // pred_region
      %s11 = ssub.s32 256, 256
      %12 = vsyncadd [#allocation3], %s11
      %s13 = sshll.u32 [#allocation2], 4
      %s14 = int_to_ptr.vmem [resolvable:$true] %s13
      %19 = dma.hbm_to_vmem [thread:$0]  %s0, 256, %s14, [#allocation3], 128, 128, 8
    $region5: #{tpu_custom_call.1} parent=1 // pred_fallthru
      _
    // Predicated region
    $region6: #{tpu_custom_call.1} parent=1 // pred_check
      _
    $region7: #{tpu_custom_call.1} parent=1 // pred_check_branch
      %21 = sbr.rel (0) target = $region9
    $region8: #{tpu_custom_call.1} parent=1 // pred_region
      %22 = dma.done [#allocation3], 256
    $region9: #{tpu_custom_call.1} parent=1 // pred_fallthru
      _
    %v23 = vld [vmem:[#allocation2] sm:$0xff]
    %v24 = vld [vmem:[#allocation2 + $0x8] sm:$0xff]
    %v27 = vcombine.high %v23, %v23
    %v29 = vunpack.c.l.s4 1966171168
    %v30 = vunpack.c.0.s8 %v29
    %v31 = vlaneseq
    %v32 = vshrl.u32 %v31, 7
    %v33 = vsub.s32 %v30, %v32
    %v34 = vrot.slane %v23, %v33
    %v36 = vunpack.c.l.s4 1966171168
    %v37 = vunpack.c.0.s8 %v36
    %v38 = vlaneseq
    %v39 = vshrl.u32 %v38, 7
    %v40 = vsub.s32 %v37, %v39
    %v41 = vrot.slane %v27, %v40
    %v42 = vcombine.high %v34, %v34
    %v43 = vcombine.high %v41, %v41
    %v45 = vunpack.c.l.s4 1966171168
    %v46 = vunpack.c.0.s8 %v45
    %v47 = vlaneseq
    %v48 = vshrl.u32 %v47, 7
    %v49 = vsub.s32 %v46, %v48
    %v50 = vrot.slane %v34, %v49
    %v52 = vunpack.c.l.s4 1966171168
    %v53 = vunpack.c.0.s8 %v52
    %v54 = vlaneseq
    %v55 = vshrl.u32 %v54, 7
    %v56 = vsub.s32 %v53, %v55
    %v57 = vrot.slane %v41, %v56
    %v59 = vunpack.c.l.s4 1966171168
    %v60 = vunpack.c.0.s8 %v59
    %v61 = vlaneseq
    %v62 = vshrl.u32 %v61, 7
    %v63 = vsub.s32 %v60, %v62
    %v64 = vrot.slane %v42, %v63
    %v66 = vunpack.c.l.s4 1966171168
    %v67 = vunpack.c.0.s8 %v66
    %v68 = vlaneseq
    %v69 = vshrl.u32 %v68, 7
    %v70 = vsub.s32 %v67, %v69
    %v71 = vrot.slane %v43, %v70
    %v72 = vcombine.high %v50, %v50
    %v73 = vcombine.high %v57, %v57
    %v74 = vcombine.high %v64, %v64
    %v75 = vcombine.high %v71, %v71
    %v76 = vcombine.high %v24, %v24
    %v78 = vunpack.c.l.s4 1966171168
    %v79 = vunpack.c.0.s8 %v78
    %v80 = vlaneseq
    %v81 = vshrl.u32 %v80, 7
    %v82 = vsub.s32 %v79, %v81
    %v83 = vrot.slane %v24, %v82
    %v85 = vunpack.c.l.s4 1966171168
    %v86 = vunpack.c.0.s8 %v85
    %v87 = vlaneseq
    %v88 = vshrl.u32 %v87, 7
    %v89 = vsub.s32 %v86, %v88
    %v90 = vrot.slane %v76, %v89
    %v91 = vcombine.high %v83, %v83
    %v92 = vcombine.high %v90, %v90
    %v94 = vunpack.c.l.s4 1966171168
    %v95 = vunpack.c.0.s8 %v94
    %v96 = vlaneseq
    %v97 = vshrl.u32 %v96, 7
    %v98 = vsub.s32 %v95, %v97
    %v99 = vrot.slane %v83, %v98
    %v101 = vunpack.c.l.s4 1966171168
    %v102 = vunpack.c.0.s8 %v101
    %v103 = vlaneseq
    %v104 = vshrl.u32 %v103, 7
    %v105 = vsub.s32 %v102, %v104
    %v106 = vrot.slane %v90, %v105
    %v108 = vunpack.c.l.s4 1966171168
    %v109 = vunpack.c.0.s8 %v108
    %v110 = vlaneseq
    %v111 = vshrl.u32 %v110, 7
    %v112 = vsub.s32 %v109, %v111
    %v113 = vrot.slane %v91, %v112
    %v115 = vunpack.c.l.s4 1966171168
    %v116 = vunpack.c.0.s8 %v115
    %v117 = vlaneseq
    %v118 = vshrl.u32 %v117, 7
    %v119 = vsub.s32 %v116, %v118
    %v120 = vrot.slane %v92, %v119
    %v121 = vcombine.high %v99, %v99
    %v122 = vcombine.high %v106, %v106
    %v123 = vcombine.high %v113, %v113
    %v124 = vcombine.high %v120, %v120
    %v125 = vlaneseq
    %v126 = vshrl.u32 %v125, 7
    %v127 = vsub.s32 0, %v126
    %v128 = vrot.slane %v50, %v127
    %v129 = vlaneseq
    %v130 = vshrl.u32 %v129, 7
    %v131 = vsub.s32 0, %v130
    %v132 = vrot.slane %v64, %v131
    %v133 = vlaneseq
    %v134 = vshrl.u32 %v133, 7
    %v135 = vsub.s32 0, %v134
    %v136 = vrot.slane %v72, %v135
    %v137 = vlaneseq
    %v138 = vshrl.u32 %v137, 7
    %v139 = vsub.s32 0, %v138
    %v140 = vrot.slane %v74, %v139
    %v141 = vlaneseq
    %v142 = vshrl.u32 %v141, 7
    %v143 = vsub.s32 0, %v142
    %v144 = vrot.slane %v57, %v143
    %v145 = vlaneseq
    %v146 = vshrl.u32 %v145, 7
    %v147 = vsub.s32 0, %v146
    %v148 = vrot.slane %v71, %v147
    %v149 = vlaneseq
    %v150 = vshrl.u32 %v149, 7
    %v151 = vsub.s32 0, %v150
    %v152 = vrot.slane %v73, %v151
    %v153 = vlaneseq
    %v154 = vshrl.u32 %v153, 7
    %v155 = vsub.s32 0, %v154
    %v156 = vrot.slane %v75, %v155
    %v157 = vlaneseq
    %v158 = vshrl.u32 %v157, 7
    %v159 = vsub.s32 0, %v158
    %v160 = vrot.slane %v99, %v159
    %v161 = vlaneseq
    %v162 = vshrl.u32 %v161, 7
    %v163 = vsub.s32 0, %v162
    %v164 = vrot.slane %v113, %v163
    %v165 = vlaneseq
    %v166 = vshrl.u32 %v165, 7
    %v167 = vsub.s32 0, %v166
    %v168 = vrot.slane %v121, %v167
    %v169 = vlaneseq
    %v170 = vshrl.u32 %v169, 7
    %v171 = vsub.s32 0, %v170
    %v172 = vrot.slane %v123, %v171
    %v173 = vlaneseq
    %v174 = vshrl.u32 %v173, 7
    %v175 = vsub.s32 0, %v174
    %v176 = vrot.slane %v106, %v175
    %v177 = vlaneseq
    %v178 = vshrl.u32 %v177, 7
    %v179 = vsub.s32 0, %v178
    %v180 = vrot.slane %v120, %v179
    %v181 = vlaneseq
    %v182 = vshrl.u32 %v181, 7
    %v183 = vsub.s32 0, %v182
    %v184 = vrot.slane %v122, %v183
    %v185 = vlaneseq
    %v186 = vshrl.u32 %v185, 7
    %v187 = vsub.s32 0, %v186
    %v188 = vrot.slane %v124, %v187
    %s205 = smul.u32 0, 8
    %s206 = scalar_lea.vmem [#allocation5], %s205
    %207 = vst [vmem:[%s206] sm:$0xff] %v128
    %208 = vst [vmem:[%s206 + $0x8] sm:$0xff] %v132
    %209 = vst [vmem:[%s206 + $0x10] sm:$0xff] %v136
    %210 = vst [vmem:[%s206 + $0x18] sm:$0xff] %v140
    %211 = vst [vmem:[%s206 + $0x20] sm:$0xff] %v144
    %212 = vst [vmem:[%s206 + $0x28] sm:$0xff] %v148
    %213 = vst [vmem:[%s206 + $0x30] sm:$0xff] %v152
    %214 = vst [vmem:[%s206 + $0x38] sm:$0xff] %v156
    %215 = vst [vmem:[%s206 + $0x40] sm:$0xff] %v160
    %216 = vst [vmem:[%s206 + $0x48] sm:$0xff] %v164
    %217 = vst [vmem:[%s206 + $0x50] sm:$0xff] %v168
    %218 = vst [vmem:[%s206 + $0x58] sm:$0xff] %v172
    %219 = vst [vmem:[%s206 + $0x60] sm:$0xff] %v176
    %220 = vst [vmem:[%s206 + $0x68] sm:$0xff] %v180
    %221 = vst [vmem:[%s206 + $0x70] sm:$0xff] %v184
    %222 = vst [vmem:[%s206 + $0x78] sm:$0xff] %v188
    // Predicated region
    $region10: #{tpu_custom_call.1} parent=1 // pred_check
      _
    $region11: #{tpu_custom_call.1} parent=1 // pred_check_branch
      %224 = sbr.rel (0) target = $region13
    $region12: #{tpu_custom_call.1} parent=1 // pred_region
      %s226 = ssub.s32 2048, 2048
      %227 = vsyncadd [#allocation4], %s226
      %s228 = sshll.u32 [#allocation5], 4
      %s229 = int_to_ptr.vmem [resolvable:$true] %s228
      %234 = dma.vmem_to_hbm [thread:$0]  %s229, 2048, %s1, [#allocation4], 128, 128, 8
    $region13: #{tpu_custom_call.1} parent=1 // pred_fallthru
      _
    // Predicated region
    $region14: #{tpu_custom_call.1} parent=1 // pred_check
      _
    $region15: #{tpu_custom_call.1} parent=1 // pred_check_branch
      %236 = sbr.rel (0) target = $region17
    $region16: #{tpu_custom_call.1} parent=1 // pred_region
      %237 = dma.done [#allocation4], 2048
    $region17: #{tpu_custom_call.1} parent=1 // pred_fallthru
      _
    %238 = vsyncpa [#allocation3], 1
    %239 = vsyncpa [#allocation4], 1

</llo_original>
